<compile_context>
chip_gen: v7x
topology: tpu7x:2x2x1
jax: 0.10.0
libtpu: 0.0.40
codegen_flags: <defaults>
</compile_context>

<pallas_src>
import math

import jax
import jax.numpy as jnp
from jax import lax
from jax.experimental import pallas as pl
from jax.experimental.pallas import tpu as pltpu

_MIB = 1024 * 1024
# Two weight streams x two pipeline buffers of (TN, in) tiles must fit this to
# take the single-K fast path.
_FULL_K_BUDGET = 16 * _MIB
# (M, K) x (N, K) contracted on the shared last axis -> (M, N); feeds the MXU
# without materializing a transposed weight tile.
_RHS_CONTRACT_LAST = (((1,), (1,)), ((), ()))
# TODO(synk): confirm via pl.lower_as_mlir on the target chip that no per-tile
# vxpose is emitted for this rhs-last contraction; if one appears, pass the
# weights pre-transposed as (in, out) from the wrapper instead.


def _noisy_linear_kernel_fullk(x_ref, wmu_ref, wsig_ref, eps_in_ref,
                               eps_out_ref, beff_ref, o_ref):
    """Single-K-block fast path: whole reduction in one step, no scratch."""
    w_dt = wmu_ref.dtype
    x = x_ref[...]
    xm = x.astype(w_dt)
    xs = (x * eps_in_ref[...]).astype(w_dt)        # eps math in f32, cast for MXU
    acc = lax.dot_general(xm, wmu_ref[...],
                          dimension_numbers=_RHS_CONTRACT_LAST,
                          preferred_element_type=jnp.float32)
    acc += lax.dot_general(xs, wsig_ref[...],
                           dimension_numbers=_RHS_CONTRACT_LAST,
                           preferred_element_type=jnp.float32) * eps_out_ref[...]
    o_ref[...] = (acc + beff_ref[...]).astype(o_ref.dtype)


def _noisy_linear_kernel_tiled(x_ref, wmu_ref, wsig_ref, eps_in_ref,
                               eps_out_ref, beff_ref, o_ref, acc_ref):
    """K-tiled path.  x_ref / eps_in_ref are K-resident, shaped (Kb, TM, TK)
    and (Kb, 1, TK); the k grid index selects the current slice in VMEM."""
    k = pl.program_id(2)

    @pl.when(k == 0)
    def _init():
        acc_ref[...] = jnp.zeros_like(acc_ref)

    w_dt = wmu_ref.dtype
    x_blk = x_ref[k]                                # (TM, TK) leading-axis index
    ein = eps_in_ref[k]                             # (1,  TK)
    xm = x_blk.astype(w_dt)
    xs = (x_blk * ein).astype(w_dt)                 # eps math in f32, cast for MXU

    part_mu = lax.dot_general(xm, wmu_ref[...],
                              dimension_numbers=_RHS_CONTRACT_LAST,
                              preferred_element_type=jnp.float32)
    part_sig = lax.dot_general(xs, wsig_ref[...],
                               dimension_numbers=_RHS_CONTRACT_LAST,
                               preferred_element_type=jnp.float32)
    # Rank-1 noise: per-output-column rescale of the sigma partial (cheap VPU
    # work that hides under the MXU issue of the two matmuls above).
    acc_ref[...] += part_mu + part_sig * eps_out_ref[...]

    @pl.when(k == pl.num_programs(2) - 1)
    def _finalize():
        o_ref[...] = (acc_ref[...] + beff_ref[...]).astype(o_ref.dtype)


def _pick_tm(batch):
    if batch <= 256:
        return batch
    for c in (256, 128):
        if batch % c == 0:
            return c
    return batch


def _pick_tn(out_features):
    # Prefer >=2 blocks on the "parallel" N axis (v7x has 2 TensorCores) and
    # MXU-native multiples of 128/256.
    for c in (512, 256, 128):
        if out_features % c == 0 and out_features // c >= 2:
            return c
    for c in (512, 256, 128):
        if out_features % c == 0:
            return c
    return out_features


def _pick_tk(in_features, tn, w_itemsize):
    # Full-K (single reduction step) whenever the two double-buffered weight
    # streams fit the budget: drops the K grid axis, accumulator and pl.when.
    if 2 * 2 * tn * in_features * w_itemsize <= _FULL_K_BUDGET:
        return in_features
    for c in (1024, 512, 256, 128):
        if in_features % c == 0:
            return c
    return in_features


def _vmem_limit_bytes(tm, tn, tk, in_features, x_itemsize, w_itemsize,
                      out_itemsize):
    est = (2 * tm * in_features * x_itemsize        # resident x (double-buffered)
           + 2 * 2 * tn * tk * w_itemsize           # 2 weight streams, 2 buffers
           + 2 * tm * tn * out_itemsize             # output block
           + tm * tn * 4                            # f32 accumulator scratch
           + 4 * in_features * 4 + 8 * tn * 4)      # eps / bias rows (tiny)
    # 1.5x headroom for compiler-internal scratch; cap at 48 MiB so the plan
    # stays safe on v7x (64 MiB physical VMEM per TensorCore).
    return int(min(48 * _MIB, max(16 * _MIB, 1.5 * est)))


def factorized_noisy_linear(x, weight_mu, weight_sigma, eps_in, eps_out,
                            bias_mu, bias_sigma, *, tm=None, tn=None, tk=None,
                            weights_dtype=None):
    """Pallas TPU implementation of FactorizedNoisyLinear.forward.

    eps_in: (in_features,), eps_out: (out_features,) are the factorized noise
    vectors (weight_epsilon = outer(eps_out, eps_in); bias_epsilon = eps_out);
    disable_noise() corresponds to passing zero vectors.
    `weights_dtype=jnp.bfloat16` streams the two weight matrices at half the
    HBM cost (f32 accumulation, eps/bias math kept in f32).
    """
    batch, in_features = x.shape
    out_features, in_w = weight_mu.shape
    assert in_w == in_features

    w_dt = jnp.dtype(weights_dtype) if weights_dtype is not None else weight_mu.dtype
    wmu = weight_mu.astype(w_dt)
    wsig = weight_sigma.astype(w_dt)

    tm = tm or _pick_tm(batch)
    tn = tn or _pick_tn(out_features)
    tk = tk or _pick_tk(in_features, tn, w_dt.itemsize)
    assert batch % tm == 0 and out_features % tn == 0 and in_features % tk == 0

    f32 = jnp.float32
    eps_in_f = eps_in.astype(f32)
    eps_out_row = eps_out.astype(f32).reshape(1, out_features)
    # Bias path is O(out): fold it once here; bias_epsilon == eps_out.
    b_eff = (bias_mu.astype(f32)
             + bias_sigma.astype(f32) * eps_out.astype(f32)
             ).reshape(1, out_features)

    vmem_limit = _vmem_limit_bytes(tm, tn, tk, in_features, x.dtype.itemsize,
                                   w_dt.itemsize, x.dtype.itemsize)
    out_shape = jax.ShapeDtypeStruct((batch, out_features), x.dtype)

    if tk == in_features:
        # Fast path: whole K in one step; typical NoisyLinear layers land here.
        grid = (batch // tm, out_features // tn)
        return pl.pallas_call(
            _noisy_linear_kernel_fullk,
            out_shape=out_shape,
            grid_spec=pltpu.PrefetchScalarGridSpec(
                num_scalar_prefetch=0,
                grid=grid,
                in_specs=[
                    pl.BlockSpec((tm, in_features), lambda m, n: (m, 0)),  # x (K-resident)
                    pl.BlockSpec((tn, in_features), lambda m, n: (n, 0)),  # weight_mu
                    pl.BlockSpec((tn, in_features), lambda m, n: (n, 0)),  # weight_sigma
                    pl.BlockSpec((1, in_features), lambda m, n: (0, 0)),   # eps_in row
                    pl.BlockSpec((1, tn), lambda m, n: (0, n)),            # eps_out row
                    pl.BlockSpec((1, tn), lambda m, n: (0, n)),            # fused bias
                ],
                out_specs=pl.BlockSpec((tm, tn), lambda m, n: (m, n)),
            ),
            compiler_params=pltpu.CompilerParams(
                dimension_semantics=("parallel", "parallel"),
                vmem_limit_bytes=vmem_limit,
            ),
        )(x, wmu, wsig, eps_in_f.reshape(1, in_features), eps_out_row, b_eff)

    # Tiled path: K reduction innermost / "arbitrary" with an f32 accumulator.
    kb = in_features // tk
    # Pre-split x / eps_in along K so the kernel indexes the k-th slice on the
    # leading axis of a VMEM-resident buffer (no per-(n,k) re-DMA of x and no
    # dynamic lane-dim slicing).  x is tiny relative to the weight streams, so
    # this one-time wrapper transpose is negligible.
    x_split = x.reshape(batch, kb, tk).transpose(1, 0, 2)       # (Kb, B, TK)
    eps_in_split = eps_in_f.reshape(kb, 1, tk)                  # (Kb, 1, TK)

    grid = (batch // tm, out_features // tn, kb)
    return pl.pallas_call(
        _noisy_linear_kernel_tiled,
        out_shape=out_shape,
        grid_spec=pltpu.PrefetchScalarGridSpec(
            num_scalar_prefetch=0,
            grid=grid,
            in_specs=[
                pl.BlockSpec((kb, tm, tk), lambda m, n, k: (0, m, 0)),   # x, K-resident
                pl.BlockSpec((tn, tk), lambda m, n, k: (n, k)),          # weight_mu
                pl.BlockSpec((tn, tk), lambda m, n, k: (n, k)),          # weight_sigma
                pl.BlockSpec((kb, 1, tk), lambda m, n, k: (0, 0, 0)),    # eps_in, resident
                pl.BlockSpec((1, tn), lambda m, n, k: (0, n)),           # eps_out row
                pl.BlockSpec((1, tn), lambda m, n, k: (0, n)),           # fused bias
            ],
            out_specs=pl.BlockSpec((tm, tn), lambda m, n, k: (m, n)),
            scratch_shapes=[pltpu.VMEM((tm, tn), jnp.float32)],
        ),
        compiler_params=pltpu.CompilerParams(
            dimension_semantics=("parallel", "parallel", "arbitrary"),
            vmem_limit_bytes=vmem_limit,
        ),
    )(x_split, wmu, wsig, eps_in_split, eps_out_row, b_eff)


def _factorized_noise(key, n):
    """f(x) = sign(x) * sqrt(|x|) on standard-normal draws (matches _get_noise)."""
    g = jax.random.normal(key, (n,), jnp.float32)
    return jnp.sign(g) * jnp.sqrt(jnp.abs(g))


def _reference(x, wmu, wsig, eps_in, eps_out, bmu, bsig):
    w_eff = wmu + wsig * jnp.outer(eps_out, eps_in)
    b_eff = bmu + bsig * eps_out
    return jnp.dot(x, w_eff.T, precision=lax.Precision.HIGHEST) + b_eff


if __name__ == "__main__":
    key = jax.random.PRNGKey(0)
    sigma_0 = 0.5

    # ---- Case A: tiny layer (single-block fast path), module-default init.
    B, in_f, out_f = 8, 32, 64
    scale = 1.0 / math.sqrt(in_f)
    k_w, k_b, k_ei, k_eo, k_x, key = jax.random.split(key, 6)
    weight_mu = jax.random.uniform(k_w, (out_f, in_f), jnp.float32, -scale, scale)
    bias_mu = jax.random.uniform(k_b, (out_f,), jnp.float32, -scale, scale)
    weight_sigma = jnp.full((out_f, in_f), sigma_0 * scale, jnp.float32)
    bias_sigma = jnp.full((out_f,), sigma_0 * scale, jnp.float32)
    x = jax.random.normal(k_x, (B, in_f), jnp.float32)

    # A1: noise disabled (disable_noise()) -> epsilon buffers are zero.
    eps_in0 = jnp.zeros((in_f,), jnp.float32)
    eps_out0 = jnp.zeros((out_f,), jnp.float32)
    y = jax.block_until_ready(factorized_noisy_linear(
        x, weight_mu, weight_sigma, eps_in0, eps_out0, bias_mu, bias_sigma))
    ref = _reference(x, weight_mu, weight_sigma, eps_in0, eps_out0, bias_mu, bias_sigma)
    assert y.shape == (B, out_f)
    assert jnp.allclose(y, ref, atol=1e-4, rtol=1e-4), "mismatch: tiny, noise off"

    # A2: noise enabled (reset_noise()).
    eps_in = _factorized_noise(k_ei, in_f)
    eps_out = _factorized_noise(k_eo, out_f)
    y = jax.block_until_ready(factorized_noisy_linear(
        x, weight_mu, weight_sigma, eps_in, eps_out, bias_mu, bias_sigma))
    ref = _reference(x, weight_mu, weight_sigma, eps_in, eps_out, bias_mu, bias_sigma)
    assert jnp.allclose(y, ref, atol=1e-4, rtol=1e-4), "mismatch: tiny, noise on"

    # ---- Case B: force the K-tiled reduction path (grid 1x2x2) to exercise
    # the accumulator / pl.when machinery and the resident-x split.
    B2, in2, out2 = 8, 256, 256
    scale2 = 1.0 / math.sqrt(in2)
    k_w, k_b, k_ei, k_eo, k_x, key = jax.random.split(key, 6)
    wmu2 = jax.random.uniform(k_w, (out2, in2), jnp.float32, -scale2, scale2)
    bmu2 = jax.random.uniform(k_b, (out2,), jnp.float32, -scale2, scale2)
    wsig2 = jnp.full((out2, in2), sigma_0 * scale2, jnp.float32)
    bsig2 = jnp.full((out2,), sigma_0 * scale2, jnp.float32)
    x2 = jax.random.normal(k_x, (B2, in2), jnp.float32)
    eps_in2 = _factorized_noise(k_ei, in2)
    eps_out2 = _factorized_noise(k_eo, out2)

    y2 = jax.block_until_ready(factorized_noisy_linear(
        x2, wmu2, wsig2, eps_in2, eps_out2, bmu2, bsig2, tn=128, tk=128))
    ref2 = _reference(x2, wmu2, wsig2, eps_in2, eps_out2, bmu2, bsig2)
    assert jnp.allclose(y2, ref2, atol=1e-3, rtol=1e-3), "mismatch: tiled path"

    # ---- Case C: bf16 weight streaming (halved HBM traffic on the two weight
    # streams); reference mirrors the kernel's bf16 rounding with f32 accumulate.
    y3 = jax.block_until_ready(factorized_noisy_linear(
        x2, wmu2, wsig2, eps_in2, eps_out2, bmu2, bsig2, tn=128, tk=128,
        weights_dtype=jnp.bfloat16))
    rd = lambda a: a.astype(jnp.bfloat16).astype(jnp.float32)
    ref3 = (jnp.dot(rd(x2), rd(wmu2).T, precision=lax.Precision.HIGHEST)
            + jnp.dot(rd(x2 * eps_in2), rd(wsig2).T,
                      precision=lax.Precision.HIGHEST) * eps_out2[None, :]
            + (bmu2 + bsig2 * eps_out2)[None, :])
    assert jnp.allclose(y3, ref3, atol=2e-3, rtol=2e-3), "mismatch: bf16 weights"

    print("KERNEL_OK")
</pallas_src>

<mosaic_0001>
module attributes {stable_mosaic.version = 11 : i64} {
  func.func @_noisy_linear_kernel_fullk(%arg0: i32, %arg1: i32, %arg2: memref<8x32xf32, #tpu.memory_space<vmem>>, %arg3: memref<64x32xf32, #tpu.memory_space<vmem>>, %arg4: memref<64x32xf32, #tpu.memory_space<vmem>>, %arg5: memref<1x32xf32, #tpu.memory_space<vmem>>, %arg6: memref<1x64xf32, #tpu.memory_space<vmem>>, %arg7: memref<1x64xf32, #tpu.memory_space<vmem>>, %arg8: memref<8x64xf32, #tpu.memory_space<vmem>>) attributes {dimension_semantics = [#tpu.dimension_semantics<parallel>, #tpu.dimension_semantics<parallel>], iteration_bounds = array<i64: 1, 1>, scalar_prefetch = 0 : i64, scratch_operands = 0 : i64, tpu.core_type = #tpu.core_type<tc>, window_params = [{transform_indices = @transform_0, window_bounds = array<i64: 8, 32>}, {transform_indices = @transform_1, window_bounds = array<i64: 64, 32>}, {transform_indices = @transform_2, window_bounds = array<i64: 64, 32>}, {pipeline_mode = #tpu.pipeline_mode<synchronous>, transform_indices = @transform_3, window_bounds = array<i64: 1, 32>}, {transform_indices = @transform_4, window_bounds = array<i64: 1, 64>}, {transform_indices = @transform_5, window_bounds = array<i64: 1, 64>}, {transform_indices = @transform_6, window_bounds = array<i64: 8, 64>}]} {
    %c0 = arith.constant 0 : index
    %c0_0 = arith.constant 0 : index
    %0 = vector.load %arg2[%c0, %c0_0] : memref<8x32xf32, #tpu.memory_space<vmem>>, vector<8x32xf32>
    %c0_1 = arith.constant 0 : index
    %c0_2 = arith.constant 0 : index
    %1 = vector.load %arg5[%c0_1, %c0_2] : memref<1x32xf32, #tpu.memory_space<vmem>>, vector<1x32xf32>
    %2 = vector.broadcast %1 : vector<1x32xf32> to vector<8x32xf32>
    %3 = arith.mulf %0, %2 : vector<8x32xf32>
    %c0_3 = arith.constant 0 : index
    %c0_4 = arith.constant 0 : index
    %4 = vector.load %arg3[%c0_3, %c0_4] : memref<64x32xf32, #tpu.memory_space<vmem>>, vector<64x32xf32>
    %cst = arith.constant dense<0.000000e+00> : vector<8x64xf32>
    %5 = tpu.matmul %0, %4, %cst {dimension_numbers = #tpu.dot_dimension_numbers<[1], [1], [0], [0], [0, 0, 1, 0], [], []>} : vector<8x32xf32>, vector<64x32xf32>, vector<8x64xf32> -> vector<8x64xf32>
    %c0_5 = arith.constant 0 : index
    %c0_6 = arith.constant 0 : index
    %6 = vector.load %arg4[%c0_5, %c0_6] : memref<64x32xf32, #tpu.memory_space<vmem>>, vector<64x32xf32>
    %cst_7 = arith.constant dense<0.000000e+00> : vector<8x64xf32>
    %7 = tpu.matmul %3, %6, %cst_7 {dimension_numbers = #tpu.dot_dimension_numbers<[1], [1], [0], [0], [0, 0, 1, 0], [], []>} : vector<8x32xf32>, vector<64x32xf32>, vector<8x64xf32> -> vector<8x64xf32>
    %c0_8 = arith.constant 0 : index
    %c0_9 = arith.constant 0 : index
    %8 = vector.load %arg6[%c0_8, %c0_9] : memref<1x64xf32, #tpu.memory_space<vmem>>, vector<1x64xf32>
    %9 = vector.broadcast %8 : vector<1x64xf32> to vector<8x64xf32>
    %10 = arith.mulf %7, %9 : vector<8x64xf32>
    %11 = arith.addf %5, %10 : vector<8x64xf32>
    %c0_10 = arith.constant 0 : index
    %c0_11 = arith.constant 0 : index
    %12 = vector.load %arg7[%c0_10, %c0_11] : memref<1x64xf32, #tpu.memory_space<vmem>>, vector<1x64xf32>
    %13 = vector.broadcast %12 : vector<1x64xf32> to vector<8x64xf32>
    %14 = arith.addf %11, %13 : vector<8x64xf32>
    %c0_12 = arith.constant 0 : index
    %c0_13 = arith.constant 0 : index
    %15 = vector.load %arg8[%c0_12, %c0_13] : memref<8x64xf32, #tpu.memory_space<vmem>>, vector<8x64xf32>
    tpu.vector_store %arg8[%c0_12, %c0_13], %14 {strides = array<i32>} : memref<8x64xf32, #tpu.memory_space<vmem>>, vector<8x64xf32>,
    return
  }
  func.func @transform_0(%arg0: i32, %arg1: i32) -> (i32, i32) {
    %c0_i32 = arith.constant 0 : i32
    %c0_i32_0 = arith.constant 0 : i32
    return %arg0, %c0_i32 : i32, i32
  }
  func.func @transform_1(%arg0: i32, %arg1: i32) -> (i32, i32) {
    %c0_i32 = arith.constant 0 : i32
    %c0_i32_0 = arith.constant 0 : i32
    return %arg1, %c0_i32 : i32, i32
  }
  func.func @transform_2(%arg0: i32, %arg1: i32) -> (i32, i32) {
    %c0_i32 = arith.constant 0 : i32
    %c0_i32_0 = arith.constant 0 : i32
    return %arg1, %c0_i32 : i32, i32
  }
  func.func @transform_3(%arg0: i32, %arg1: i32) -> (i32, i32) {
    %c0_i32 = arith.constant 0 : i32
    %c0_i32_0 = arith.constant 0 : i32
    %c0_i32_1 = arith.constant 0 : i32
    return %c0_i32, %c0_i32_0 : i32, i32
  }
  func.func @transform_4(%arg0: i32, %arg1: i32) -> (i32, i32) {
    %c0_i32 = arith.constant 0 : i32
    %c0_i32_0 = arith.constant 0 : i32
    return %c0_i32, %arg1 : i32, i32
  }
  func.func @transform_5(%arg0: i32, %arg1: i32) -> (i32, i32) {
    %c0_i32 = arith.constant 0 : i32
    %c0_i32_0 = arith.constant 0 : i32
    return %c0_i32, %arg1 : i32, i32
  }
  func.func @transform_6(%arg0: i32, %arg1: i32) -> (i32, i32) {
    %c0_i32 = arith.constant 0 : i32
    return %arg0, %arg1 : i32, i32
  }
}

</mosaic_0001>

<llo_original>
// kernel: tpu_custom_call.1
$region0: #{tpu_custom_call.1}
  #allocation0 [shape = 'u32[]', space=smem, size = 0x4, offset = 0x4, fixed_abs, tag = 'smem constant byte address 0x4 - core index']
  #allocation1 [shape = 'u32[144,128]{1,0:T(1,128)}', space=vmem, size = 0x12000, scoped, tag = 'internal scratch']
  %s0 = inlined_call_operand.vmem [shape: f32[8,32], index: 0, kind: input, shape index: {}]
  %s1 = inlined_call_operand.vmem [shape: f32[64,32], index: 1, kind: input, shape index: {}]
  %s2 = inlined_call_operand.vmem [shape: f32[64,32], index: 2, kind: input, shape index: {}]
  %s3 = inlined_call_operand.vmem [shape: f32[1,32], index: 3, kind: input, shape index: {}]
  %s4 = inlined_call_operand.vmem [shape: f32[1,64], index: 4, kind: input, shape index: {}]
  %s5 = inlined_call_operand.vmem [shape: f32[1,64], index: 5, kind: input, shape index: {}]
  %s6 = inlined_call_operand.hbm [shape: f32[8,64], index: 6, kind: output, shape index: {}]
  %s7 = sld [smem:[#allocation0]]
  $region34: #{tpu_custom_call.1} parent=0
    _
  %s9 = ssub.s32 1, %s7
  %s10 = scalar_select 0, %s9, %s7
  $region1: #{tpu_custom_call.1} parent=0
    #allocation2 [shape = 'u8[4096]{0}', space=vmem, size = 0x1000, scoped, tag = 'output window, operand 0, single buffered']
    #allocation3 [shape = 's32[1]{0}', space=sflag, size = 0x4, scoped, tag = 'scoped memory for tpu_custom_call.1']
    %11 = vsyncpa [#allocation3], 0
    // Predicated region
    $region2: #{tpu_custom_call.1} parent=1 // pred_check
      _
    $region3: #{tpu_custom_call.1} parent=1 // pred_check_branch
      %13 = sbr.rel (0) target = $region5
    $region4: #{tpu_custom_call.1} parent=1 // pred_region
      _
    $region5: #{tpu_custom_call.1} parent=1 // pred_fallthru
      _
    // Predicated region
    $region6: #{tpu_custom_call.1} parent=1 // pred_check
      _
    $region7: #{tpu_custom_call.1} parent=1 // pred_check_branch
      %15 = sbr.rel (0) target = $region9
    $region8: #{tpu_custom_call.1} parent=1 // pred_region
      _
    $region9: #{tpu_custom_call.1} parent=1 // pred_fallthru
      _
    // Predicated region
    $region10: #{tpu_custom_call.1} parent=1 // pred_check
      _
    $region11: #{tpu_custom_call.1} parent=1 // pred_check_branch
      %17 = sbr.rel (0) target = $region13
    $region12: #{tpu_custom_call.1} parent=1 // pred_region
      _
    $region13: #{tpu_custom_call.1} parent=1 // pred_fallthru
      _
    // Predicated region
    $region14: #{tpu_custom_call.1} parent=1 // pred_check
      _
    $region15: #{tpu_custom_call.1} parent=1 // pred_check_branch
      %19 = sbr.rel (0) target = $region17
    $region16: #{tpu_custom_call.1} parent=1 // pred_region
      _
    $region17: #{tpu_custom_call.1} parent=1 // pred_fallthru
      _
    // Predicated region
    $region18: #{tpu_custom_call.1} parent=1 // pred_check
      _
    $region19: #{tpu_custom_call.1} parent=1 // pred_check_branch
      %21 = sbr.rel (0) target = $region21
    $region20: #{tpu_custom_call.1} parent=1 // pred_region
      _
    $region21: #{tpu_custom_call.1} parent=1 // pred_fallthru
      _
    // Predicated region
    $region22: #{tpu_custom_call.1} parent=1 // pred_check
      _
    $region23: #{tpu_custom_call.1} parent=1 // pred_check_branch
      %23 = sbr.rel (0) target = $region25
    $region24: #{tpu_custom_call.1} parent=1 // pred_region
      _
    $region25: #{tpu_custom_call.1} parent=1 // pred_fallthru
      _
    %v24 = vld [vmem:[%s0] sm:$0xff]
    %v25 = vld [vmem:[%s3] sm:$0x1]
    %v27 = vlaneseq
    %v28 = vshrl.u32 %v27, 7
    %v29 = vsub.s32 0, %v28
    %v30 = vrot.slane %v25, %v29
    %v32 = vmul.f32 %v24, %v30
    %v33 = vld [vmem:[%s1] sm:$0xff]
    %v34 = vld [vmem:[%s1 + $0x8] sm:$0xff]
    %v35 = vld [vmem:[%s1 + $0x10] sm:$0xff]
    %v36 = vld [vmem:[%s1 + $0x18] sm:$0xff]
    %v37 = vld [vmem:[%s1 + $0x20] sm:$0xff]
    %v38 = vld [vmem:[%s1 + $0x28] sm:$0xff]
    %v39 = vld [vmem:[%s1 + $0x30] sm:$0xff]
    %v40 = vld [vmem:[%s1 + $0x38] sm:$0xff]
    %v41 = vld [vmem:[%s2] sm:$0xff]
    %v42 = vld [vmem:[%s2 + $0x8] sm:$0xff]
    %v43 = vld [vmem:[%s2 + $0x10] sm:$0xff]
    %v44 = vld [vmem:[%s2 + $0x18] sm:$0xff]
    %v45 = vld [vmem:[%s2 + $0x20] sm:$0xff]
    %v46 = vld [vmem:[%s2 + $0x28] sm:$0xff]
    %v47 = vld [vmem:[%s2 + $0x30] sm:$0xff]
    %v48 = vld [vmem:[%s2 + $0x38] sm:$0xff]
    %vm49 = vcmask 261120
    %v51 = vsel %vm49, %v32, 0
    %v54 = vsel %vm49, %v41, 0
    %v57 = vsel %vm49, %v42, 0
    %v60 = vsel %vm49, %v43, 0
    %v63 = vsel %vm49, %v44, 0
    %v66 = vsel %vm49, %v45, 0
    %v69 = vsel %vm49, %v46, 0
    %v72 = vsel %vm49, %v47, 0
    %v75 = vsel %vm49, %v48, 0
    %77 = vmatprep.subr.mxu0 0.0
    %78 = vmatpush1.xpose.msra.mxu0 %v54
    %79 = vmatprep.subr.mxu0 0.0
    %80 = vmatpush1.xpose.msra.mxu0 %v57
    %81 = vmatprep.subr.mxu0 0.0
    %82 = vmatpush1.xpose.msra.mxu0 %v60
    %83 = vmatprep.subr.mxu0 0.0
    %84 = vmatpush1.xpose.msra.mxu0 %v63
    %85 = vmatprep.subr.mxu0 0.0
    %86 = vmatpush1.xpose.msra.mxu0 %v66
    %87 = vmatprep.subr.mxu0 0.0
    %88 = vmatpush1.xpose.msra.mxu0 %v69
    %89 = vmatprep.subr.mxu0 0.0
    %90 = vmatpush1.xpose.msra.mxu0 %v72
    %91 = vmatprep.subr.mxu0 0.0
    %92 = vmatpush1.xpose.msra.mxu0 %v75
    %93 = vmatprep.subr.mxu0 0.0
    %94 = vmatpush1.xpose.msra.mxu0 0.0
    %95 = vmatprep.subr.mxu0 0.0
    %96 = vmatpush1.xpose.msra.mxu0 0.0
    %97 = vmatprep.subr.mxu0 0.0
    %98 = vmatpush1.xpose.msra.mxu0 0.0
    %99 = vmatprep.subr.mxu0 0.0
    %100 = vmatpush1.xpose.msra.mxu0 0.0
    %101 = vmatprep.subr.mxu0 0.0
    %102 = vmatpush1.xpose.msra.mxu0 0.0
    %103 = vmatprep.subr.mxu0 0.0
    %104 = vmatpush1.xpose.msra.mxu0 0.0
    %105 = vmatprep.subr.mxu0 0.0
    %106 = vmatpush1.xpose.msra.mxu0 0.0
    %107 = vmatprep.subr.mxu0 0.0
    %108 = vmatpush1.xpose.msra.mxu0 0.0
    %109 = vmatprep.subr.mxu0 0.0
    %110 = vmatpush1.xpose.msra.mxu0 0.0
    %111 = vmatprep.subr.mxu0 0.0
    %112 = vmatpush1.xpose.msra.mxu0 0.0
    %113 = vmatprep.subr.mxu0 0.0
    %114 = vmatpush1.xpose.msra.mxu0 0.0
    %115 = vmatprep.subr.mxu0 0.0
    %116 = vmatpush1.xpose.msra.mxu0 0.0
    %117 = vmatprep.subr.mxu0 0.0
    %118 = vmatpush1.xpose.msra.mxu0 0.0
    %119 = vmatprep.subr.mxu0 0.0
    %120 = vmatpush1.xpose.msra.mxu0 0.0
    %121 = vmatprep.subr.mxu0 0.0
    %122 = vmatpush1.xpose.msra.mxu0 0.0
    %123 = vmatprep.subr.mxu0 0.0
    %124 = vmatpush1.xpose.msra.mxu0 0.0
    %125 = vmatprep.subr.mxu0 0.0
    %126 = vmatpush1.xpose.msra.mxu0 0.0
    %127 = vmatprep.subr.mxu0 0.0
    %128 = vmatpush1.xpose.msra.mxu0 0.0
    %129 = vmatprep.subr.mxu0 0.0
    %130 = vmatpush1.xpose.msra.mxu0 0.0
    %131 = vmatprep.subr.mxu0 0.0
    %132 = vmatpush1.xpose.msra.mxu0 0.0
    %133 = vmatprep.subr.mxu0 0.0
    %134 = vmatpush1.xpose.msra.mxu0 0.0
    %135 = vmatprep.subr.mxu0 0.0
    %136 = vmatpush1.xpose.msra.mxu0 0.0
    %137 = vmatprep.subr.mxu0 0.0
    %138 = vmatpush1.xpose.msra.mxu0 0.0
    %139 = vmatprep.subr.mxu0 0.0
    %140 = vmatpush1.xpose.msra.mxu0 0.0
    %141 = vmatprep.mubr.f32.mxu0 0.0
    %142 = vmatmul.mubr.f32.gmra.mrb[0].mxu0 %v51
    %v143 = vpop.f32.mrb[0].mxu0
    %v144 = vadd.f32 0.0, %v143
    %v145 = vpop.f32.mrb[0].mxu0
    %146 = vdwg.mxu0
    %v147 = vld [vmem:[%s4] sm:$0x1]
    %v149 = vlaneseq
    %v150 = vshrl.u32 %v149, 7
    %v151 = vsub.s32 0, %v150
    %v152 = vrot.slane %v147, %v151
    %v154 = vmul.f32 %v144, %v152
    %v156 = vsel %vm49, %v24, 0
    %v159 = vsel %vm49, %v33, 0
    %v162 = vsel %vm49, %v34, 0
    %v165 = vsel %vm49, %v35, 0
    %v168 = vsel %vm49, %v36, 0
    %v171 = vsel %vm49, %v37, 0
    %v174 = vsel %vm49, %v38, 0
    %v177 = vsel %vm49, %v39, 0
    %v180 = vsel %vm49, %v40, 0
    %182 = vmatprep.subr.mxu0 0.0
    %183 = vmatpush1.xpose.msra.mxu0 %v159
    %184 = vmatprep.subr.mxu0 0.0
    %185 = vmatpush1.xpose.msra.mxu0 %v162
    %186 = vmatprep.subr.mxu0 0.0
    %187 = vmatpush1.xpose.msra.mxu0 %v165
    %188 = vmatprep.subr.mxu0 0.0
    %189 = vmatpush1.xpose.msra.mxu0 %v168
    %190 = vmatprep.subr.mxu0 0.0
    %191 = vmatpush1.xpose.msra.mxu0 %v171
    %192 = vmatprep.subr.mxu0 0.0
    %193 = vmatpush1.xpose.msra.mxu0 %v174
    %194 = vmatprep.subr.mxu0 0.0
    %195 = vmatpush1.xpose.msra.mxu0 %v177
    %196 = vmatprep.subr.mxu0 0.0
    %197 = vmatpush1.xpose.msra.mxu0 %v180
    %198 = vmatprep.subr.mxu0 0.0
    %199 = vmatpush1.xpose.msra.mxu0 0.0
    %200 = vmatprep.subr.mxu0 0.0
    %201 = vmatpush1.xpose.msra.mxu0 0.0
    %202 = vmatprep.subr.mxu0 0.0
    %203 = vmatpush1.xpose.msra.mxu0 0.0
    %204 = vmatprep.subr.mxu0 0.0
    %205 = vmatpush1.xpose.msra.mxu0 0.0
    %206 = vmatprep.subr.mxu0 0.0
    %207 = vmatpush1.xpose.msra.mxu0 0.0
    %208 = vmatprep.subr.mxu0 0.0
    %209 = vmatpush1.xpose.msra.mxu0 0.0
    %210 = vmatprep.subr.mxu0 0.0
    %211 = vmatpush1.xpose.msra.mxu0 0.0
    %212 = vmatprep.subr.mxu0 0.0
    %213 = vmatpush1.xpose.msra.mxu0 0.0
    %214 = vmatprep.subr.mxu0 0.0
    %215 = vmatpush1.xpose.msra.mxu0 0.0
    %216 = vmatprep.subr.mxu0 0.0
    %217 = vmatpush1.xpose.msra.mxu0 0.0
    %218 = vmatprep.subr.mxu0 0.0
    %219 = vmatpush1.xpose.msra.mxu0 0.0
    %220 = vmatprep.subr.mxu0 0.0
    %221 = vmatpush1.xpose.msra.mxu0 0.0
    %222 = vmatprep.subr.mxu0 0.0
    %223 = vmatpush1.xpose.msra.mxu0 0.0
    %224 = vmatprep.subr.mxu0 0.0
    %225 = vmatpush1.xpose.msra.mxu0 0.0
    %226 = vmatprep.subr.mxu0 0.0
    %227 = vmatpush1.xpose.msra.mxu0 0.0
    %228 = vmatprep.subr.mxu0 0.0
    %229 = vmatpush1.xpose.msra.mxu0 0.0
    %230 = vmatprep.subr.mxu0 0.0
    %231 = vmatpush1.xpose.msra.mxu0 0.0
    %232 = vmatprep.subr.mxu0 0.0
    %233 = vmatpush1.xpose.msra.mxu0 0.0
    %234 = vmatprep.subr.mxu0 0.0
    %235 = vmatpush1.xpose.msra.mxu0 0.0
    %236 = vmatprep.subr.mxu0 0.0
    %237 = vmatpush1.xpose.msra.mxu0 0.0
    %238 = vmatprep.subr.mxu0 0.0
    %239 = vmatpush1.xpose.msra.mxu0 0.0
    %240 = vmatprep.subr.mxu0 0.0
    %241 = vmatpush1.xpose.msra.mxu0 0.0
    %242 = vmatprep.subr.mxu0 0.0
    %243 = vmatpush1.xpose.msra.mxu0 0.0
    %244 = vmatprep.subr.mxu0 0.0
    %245 = vmatpush1.xpose.msra.mxu0 0.0
    %246 = vmatprep.mubr.f32.mxu0 0.0
    %247 = vmatmul.mubr.f32.gmra.mrb[0].mxu0 %v156
    %v248 = vpop.f32.mrb[0].mxu0
    %v249 = vadd.f32 %v154, %v248
    %v250 = vpop.f32.mrb[0].mxu0
    %251 = vdwg.mxu0
    %v252 = vld [vmem:[%s5] sm:$0x1]
    %v254 = vlaneseq
    %v255 = vshrl.u32 %v254, 7
    %v256 = vsub.s32 0, %v255
    %v257 = vrot.slane %v252, %v256
    %v259 = vadd.f32 %v249, %v257
    %vm260 = vcmask 523264
    %261 = vst.msk [vmem:[#allocation2] sm:$0xff] %vm260, %v259
    // Predicated region
    $region26: #{tpu_custom_call.1} parent=1 // pred_check
      _
    $region27: #{tpu_custom_call.1} parent=1 // pred_check_branch
      %263 = sbr.rel (0) target = $region29
    $region28: #{tpu_custom_call.1} parent=1 // pred_region
      %s265 = ssub.s32 128, 128
      %266 = vsyncadd [#allocation3], %s265
      %s268 = sshll.u32 [#allocation2], 4
      %s269 = int_to_ptr.vmem [resolvable:$true] %s268
      %271 = dma.vmem_to_hbm [thread:$0]  %s269, 128, %s6, [#allocation3]
    $region29: #{tpu_custom_call.1} parent=1 // pred_fallthru
      _
    // Predicated region
    $region30: #{tpu_custom_call.1} parent=1 // pred_check
      _
    $region31: #{tpu_custom_call.1} parent=1 // pred_check_branch
      %273 = sbr.rel (0) target = $region33
    $region32: #{tpu_custom_call.1} parent=1 // pred_region
      %274 = dma.done [#allocation3], 128
    $region33: #{tpu_custom_call.1} parent=1 // pred_fallthru
      _
    %275 = vsyncpa [#allocation3], 1

</llo_original>
